<compile_context>
chip_gen: v7x
topology: tpu7x:2x2x1
jax: 0.10.0
libtpu: 0.0.40
codegen_flags: <defaults>
</compile_context>

<pallas_src>
import functools

import jax
import jax.numpy as jnp
from jax import lax
from jax.experimental import pallas as pl
from jax.experimental.pallas import tpu as pltpu


def _round_up(x, m):
    return (x + m - 1) // m * m


def _vmem_budget_bytes():
    """Generation-aware VMEM budget (conservative fallback = v7x-class)."""
    phys = 64 * 1024 * 1024
    try:
        info = pltpu.get_tpu_info()
        phys = int(getattr(info, "vmem_capacity_bytes", phys))
    except Exception:
        pass
    if phys <= 64 * 1024 * 1024:        # v7x: 64 MiB / TensorCore
        return 44 * 1024 * 1024
    return 64 * 1024 * 1024             # v5e / v6e: 128 MiB physical


def _choose_tm(m, k_pad, c_pad, tm_req, compute_bytes, inter_bytes, budget):
    tm = tm_req
    if k_pad <= 512:
        tm = max(tm, 1024)              # tiny-K layers: amortize per-step overhead
    tm = max(8, min(tm, _round_up(m, 8)))
    tm = _round_up(tm, 8)

    def usage(t):
        u = 2 * t * k_pad * compute_bytes            # patch tile, double-buffered
        u += k_pad * c_pad * compute_bytes           # weight resident once in VMEM
        u += 2 * t * c_pad * max(inter_bytes, 4)     # output tile, double-buffered
        u += 6 * 8 * c_pad * 4                       # stats / bias / scale / shift
        return u

    while tm > 256 and usage(tm) > budget:
        tm = max(256, _round_up(tm // 2, 8))
    return tm


# ---------------------------------------------------------------------------
# Kernel bodies
# ---------------------------------------------------------------------------
def _conv_gemm_kernel(*refs, add_bias, compute_stats):
    # BN statistics rely on padded M rows staying exactly zero: never add the
    # bias while computing stats.
    assert not (add_bias and compute_stats)
    if add_bias:
        p_ref, w_ref, b_ref, o_ref, *rest = refs
    else:
        p_ref, w_ref, o_ref, *rest = refs
    acc = jnp.dot(p_ref[...], w_ref[...], preferred_element_type=jnp.float32)
    if add_bias:
        acc = acc + b_ref[...]
    o_ref[...] = acc.astype(o_ref.dtype)
    if compute_stats:
        s_ref = rest[0]
        s_ref[0:1, :] = jnp.sum(acc, axis=0, keepdims=True)
        s_ref[1:2, :] = jnp.sum(acc * acc, axis=0, keepdims=True)


def _conv_stats_kernel(p_ref, w_ref, s_ref):
    """Small-K pass 1: GEMM -> per-tile BN partial stats only (no conv output)."""
    acc = jnp.dot(p_ref[...], w_ref[...], preferred_element_type=jnp.float32)
    s_ref[0:1, :] = jnp.sum(acc, axis=0, keepdims=True)
    s_ref[1:2, :] = jnp.sum(acc * acc, axis=0, keepdims=True)


def _conv_bn_kernel(p_ref, w_ref, scale_ref, shift_ref, o_ref):
    """Small-K pass 2: recompute GEMM fused with BN scale/shift apply."""
    acc = jnp.dot(p_ref[...], w_ref[...], preferred_element_type=jnp.float32)
    o_ref[...] = (acc * scale_ref[...] + shift_ref[...]).astype(o_ref.dtype)


def _bn_apply_kernel(x_ref, scale_ref, shift_ref, o_ref):
    """Large-K pass 2: elementwise FMA on the stored conv intermediate."""
    x = x_ref[...].astype(jnp.float32)
    o_ref[...] = (x * scale_ref[...] + shift_ref[...]).astype(o_ref.dtype)


# ---------------------------------------------------------------------------
# JAX glue: im2col (patch matrix), feature order matches weight.reshape(Co,-1)
# ---------------------------------------------------------------------------
def _im2col(x_nchw, kernel_size, stride, padding):
    n, c, h, w = x_nchw.shape
    kh = kw = kernel_size
    oh = (h + 2 * padding - kh) // stride + 1
    ow = (w + 2 * padding - kw) // stride + 1
    xp = jnp.pad(x_nchw, ((0, 0), (0, 0), (padding, padding), (padding, padding)))
    rows = []
    for ki in range(kh):
        for kj in range(kw):
            sl = xp[:, :, ki::stride, kj::stride][:, :, :oh, :ow]  # (N, C, OH, OW)
            rows.append(sl)
    patches = jnp.stack(rows, axis=0)                    # (kh*kw, N, C, OH, OW)
    patches = jnp.transpose(patches, (1, 3, 4, 2, 0))    # (N, OH, OW, C, kh*kw)
    patches = patches.reshape(n * oh * ow, c * kh * kw)  # feat = c*(kh*kw)+(ki*kw+kj)
    return patches, oh, ow


def cblock_forward(x_nchw, conv_w, conv_b, bn_gamma, bn_beta,
                   *, kernel_size=4, stride=2, padding=1,
                   act=True, batch_norm=True, eps=1e-5,
                   compute_dtype=jnp.bfloat16, tm=512,
                   small_k_recompute=None):
    """JAX/Pallas equivalent of CBlock.forward (NCHW in, NCHW out)."""
    n, c_in, h, w = x_nchw.shape
    c_out = conv_w.shape[0]
    out_dtype = x_nchw.dtype

    # LeakyReLU(0.2) on the un-expanded input, then cast to the MXU compute
    # dtype BEFORE im2col so the patch expansion is built/stored narrow.
    if act:
        xa = jnp.where(x_nchw > 0, x_nchw, jnp.asarray(0.2, x_nchw.dtype) * x_nchw)
    else:
        xa = x_nchw
    xa = xa.astype(compute_dtype)

    # TODO(synk): fuse the im2col gather into the conv kernel to remove the
    # kh*kw HBM expansion entirely.
    patches, oh, ow = _im2col(xa, kernel_size, stride, padding)
    m, k = patches.shape

    # Lane-dense padding: K and C_out to multiples of 128.
    k_pad = _round_up(k, 128)
    c_pad = _round_up(c_out, 128)

    compute_bytes = jnp.dtype(compute_dtype).itemsize
    inter_dtype = compute_dtype if batch_norm else out_dtype
    inter_bytes = jnp.dtype(inter_dtype).itemsize
    budget = _vmem_budget_bytes()

    tm_eff = _choose_tm(m, k_pad, c_pad, tm, compute_bytes, inter_bytes, budget)
    grid_m = pl.cdiv(m, tm_eff)
    # Prefer an even grid_m so v7x's two TensorCores get balanced tiles.
    if grid_m > 1 and grid_m % 2 == 1:
        alt = _round_up(pl.cdiv(m, grid_m + 1), 8)
        if alt >= 256:
            tm_eff = alt
            grid_m = pl.cdiv(m, tm_eff)
    m_pad = grid_m * tm_eff

    patches = jnp.pad(patches, ((0, m_pad - m), (0, k_pad - k)))       # bf16 pad
    w_mat = conv_w.reshape(c_out, k).T                                  # (K, C_out)
    w_mat = jnp.pad(w_mat, ((0, k_pad - k), (0, c_pad - c_out))).astype(compute_dtype)

    if small_k_recompute is None:
        small_k_recompute = batch_norm and (k_pad <= 4 * c_pad)
    small_k_recompute = bool(small_k_recompute) and batch_norm

    cparams = pltpu.CompilerParams(
        dimension_semantics=("parallel",),
        vmem_limit_bytes=budget,
    )

    patch_spec = pl.BlockSpec((tm_eff, k_pad), lambda i: (i, 0))
    out_tile_spec = pl.BlockSpec((tm_eff, c_pad), lambda i: (i, 0))
    stats_spec = pl.BlockSpec((8, c_pad), lambda i: (i, 0))
    # Constant operands: whole array resident once in VMEM (no double-buffering).
    vmem_full = pl.BlockSpec(memory_space=pltpu.MemorySpace.VMEM)

    if batch_norm:
        if small_k_recompute:
            # Pass 1: statistics only; the (M, C) intermediate never hits HBM.
            stats_out = pl.pallas_call(
                _conv_stats_kernel,
                grid=(grid_m,),
                in_specs=[patch_spec, vmem_full],
                out_specs=stats_spec,
                out_shape=jax.ShapeDtypeStruct((grid_m * 8, c_pad), jnp.float32),
                compiler_params=cparams,
            )(patches, w_mat)
            conv_out = None
        else:
            conv_out, stats_out = pl.pallas_call(
                functools.partial(_conv_gemm_kernel,
                                  add_bias=False, compute_stats=True),
                grid=(grid_m,),
                in_specs=[patch_spec, vmem_full],
                out_specs=(out_tile_spec, stats_spec),
                out_shape=(jax.ShapeDtypeStruct((m_pad, c_pad), inter_dtype),
                           jax.ShapeDtypeStruct((grid_m * 8, c_pad), jnp.float32)),
                compiler_params=cparams,
            )(patches, w_mat)

        # Tiny cross-tile reduction (grid_m x 2 x C) + per-channel scale/shift.
        stats = stats_out.reshape(grid_m, 8, c_pad)
        ch_sum = jnp.sum(stats[:, 0, :], axis=0)
        ch_sumsq = jnp.sum(stats[:, 1, :], axis=0)
        inv_m = 1.0 / float(m)                                # true M, not padded
        mean = ch_sum * inv_m
        var = jnp.maximum(ch_sumsq * inv_m - mean * mean, 0.0)  # biased variance
        gamma = jnp.pad(bn_gamma.astype(jnp.float32), (0, c_pad - c_out))
        beta = jnp.pad(bn_beta.astype(jnp.float32), (0, c_pad - c_out))
        scale_v = gamma * lax.rsqrt(var + eps)
        shift_v = beta - mean * scale_v
        scale = scale_v.reshape(1, c_pad)
        shift = shift_v.reshape(1, c_pad)

        if small_k_recompute:
            # Pass 2: recompute GEMM fused with the BN apply.
            out_flat = pl.pallas_call(
                _conv_bn_kernel,
                grid=(grid_m,),
                in_specs=[patch_spec, vmem_full, vmem_full, vmem_full],
                out_specs=out_tile_spec,
                out_shape=jax.ShapeDtypeStruct((m_pad, c_pad), out_dtype),
                compiler_params=cparams,
            )(patches, w_mat, scale, shift)
        else:
            # Pass 2: elementwise BN apply with its own (larger) M tile.
            out_bytes = jnp.dtype(out_dtype).itemsize
            tm_bn = tm_eff
            while (tm_bn * 2 <= 2048 and m_pad % (tm_bn * 2) == 0 and
                   2 * (tm_bn * 2) * c_pad * (inter_bytes + out_bytes) <= budget):
                tm_bn *= 2
            out_flat = pl.pallas_call(
                _bn_apply_kernel,
                grid=(m_pad // tm_bn,),
                in_specs=[pl.BlockSpec((tm_bn, c_pad), lambda i: (i, 0)),
                          vmem_full, vmem_full],
                out_specs=pl.BlockSpec((tm_bn, c_pad), lambda i: (i, 0)),
                out_shape=jax.ShapeDtypeStruct((m_pad, c_pad), out_dtype),
                compiler_params=cparams,
            )(conv_out, scale, shift)
    else:
        # Plain conv + bias (bias only applied on this path; it cancels under BN).
        b_mat = jnp.pad(conv_b.reshape(1, c_out),
                        ((0, 0), (0, c_pad - c_out))).astype(jnp.float32)
        out_flat = pl.pallas_call(
            functools.partial(_conv_gemm_kernel,
                              add_bias=True, compute_stats=False),
            grid=(grid_m,),
            in_specs=[patch_spec, vmem_full, vmem_full],
            out_specs=out_tile_spec,
            out_shape=jax.ShapeDtypeStruct((m_pad, c_pad), out_dtype),
            compiler_params=cparams,
        )(patches, w_mat, b_mat)

    # Strip padding, (N*OH*OW, C_out) -> NCHW (required by the module contract).
    out = out_flat[:m, :c_out].reshape(n, oh, ow, c_out).transpose(0, 3, 1, 2)
    return out


# ---------------------------------------------------------------------------
# Pure-JAX reference (for correctness check)
# ---------------------------------------------------------------------------
def cblock_reference(x, conv_w, conv_b, bn_gamma, bn_beta,
                     *, stride=2, padding=1, act=True, batch_norm=True,
                     eps=1e-5, quantize_dtype=None):
    xa = jnp.where(x > 0, x, 0.2 * x) if act else x
    w = conv_w
    if quantize_dtype is not None:       # emulate bf16 MXU operand quantization
        xa = xa.astype(quantize_dtype).astype(jnp.float32)
        w = w.astype(quantize_dtype).astype(jnp.float32)
    out = lax.conv_general_dilated(
        xa, w, window_strides=(stride, stride),
        padding=((padding, padding), (padding, padding)),
        dimension_numbers=("NCHW", "OIHW", "NCHW"))
    out = out + conv_b.reshape(1, -1, 1, 1)
    if not batch_norm:
        return out
    mean = out.mean(axis=(0, 2, 3), keepdims=True)
    var = ((out - mean) ** 2).mean(axis=(0, 2, 3), keepdims=True)
    out = (out - mean) * lax.rsqrt(var + eps)
    return out * bn_gamma.reshape(1, -1, 1, 1) + bn_beta.reshape(1, -1, 1, 1)


if __name__ == "__main__":
    key = jax.random.PRNGKey(0)
    k_x, k_w, k_b, k_g, k_bt = jax.random.split(key, 5)

    N, C_IN, C_OUT, H, W, KS = 2, 4, 8, 16, 16, 4

    x = jax.random.normal(k_x, (N, C_IN, H, W), dtype=jnp.float32)
    conv_w = jax.random.normal(k_w, (C_OUT, C_IN, KS, KS), dtype=jnp.float32) * 0.1
    conv_b = jax.random.normal(k_b, (C_OUT,), dtype=jnp.float32) * 0.1
    bn_gamma = 1.0 + 0.1 * jax.random.normal(k_g, (C_OUT,), dtype=jnp.float32)
    bn_beta = 0.1 * jax.random.normal(k_bt, (C_OUT,), dtype=jnp.float32)

    ref = cblock_reference(x, conv_w, conv_b, bn_gamma, bn_beta)
    ref_q = cblock_reference(x, conv_w, conv_b, bn_gamma, bn_beta,
                             quantize_dtype=jnp.bfloat16)

    # 1) f32 compute path, default flags (small-K recompute path).
    out_f32 = jax.block_until_ready(
        cblock_forward(x, conv_w, conv_b, bn_gamma, bn_beta,
                       compute_dtype=jnp.float32))
    assert out_f32.shape == (N, C_OUT, H // 2, W // 2), out_f32.shape
    err = float(jnp.max(jnp.abs(out_f32 - ref)))
    assert err < 1e-4, f"f32 path max err {err}"

    # 2) bf16 MXU operands + f32 accumulation, vs bf16-quantized-input reference.
    out_bf16 = jax.block_until_ready(
        cblock_forward(x, conv_w, conv_b, bn_gamma, bn_beta,
                       compute_dtype=jnp.bfloat16))
    err = float(jnp.max(jnp.abs(out_bf16 - ref_q)))
    assert err < 2e-3, f"bf16 path max err {err}"

    # 3) act=False, batch_norm=False path (plain conv + bias).
    out_plain = jax.block_until_ready(
        cblock_forward(x, conv_w, conv_b, bn_gamma, bn_beta,
                       act=False, batch_norm=False, compute_dtype=jnp.float32))
    ref_plain = cblock_reference(x, conv_w, conv_b, bn_gamma, bn_beta,
                                 act=False, batch_norm=False)
    err = float(jnp.max(jnp.abs(out_plain - ref_plain)))
    assert err < 1e-4, f"plain path max err {err}"

    # 4) large-K style path (materialized intermediate + BN-apply kernel).
    out_mat = jax.block_until_ready(
        cblock_forward(x, conv_w, conv_b, bn_gamma, bn_beta,
                       compute_dtype=jnp.float32, small_k_recompute=False))
    err = float(jnp.max(jnp.abs(out_mat - ref)))
    assert err < 1e-4, f"materialized-intermediate path max err {err}"

    print("KERNEL_OK")
</pallas_src>

<mosaic_0001>
module attributes {stable_mosaic.version = 11 : i64} {
  func.func @_conv_stats_kernel(%arg0: i32, %arg1: memref<128x128xf32, #tpu.memory_space<vmem>>, %arg2: memref<128x128xf32, #tpu.memory_space<vmem>>, %arg3: memref<8x128xf32, #tpu.memory_space<vmem>>) attributes {dimension_semantics = [#tpu.dimension_semantics<parallel>], iteration_bounds = array<i64: 1>, scalar_prefetch = 0 : i64, scratch_operands = 0 : i64, tpu.core_type = #tpu.core_type<tc>, window_params = [{transform_indices = @transform_0, window_bounds = array<i64: 128, 128>}, {pipeline_mode = #tpu.pipeline_mode<synchronous>, transform_indices = @transform_1, window_bounds = array<i64: 128, 128>}, {transform_indices = @transform_2, window_bounds = array<i64: 8, 128>}]} {
    %c0 = arith.constant 0 : index
    %c0_0 = arith.constant 0 : index
    %0 = vector.load %arg1[%c0, %c0_0] : memref<128x128xf32, #tpu.memory_space<vmem>>, vector<128x128xf32>
    %c0_1 = arith.constant 0 : index
    %c0_2 = arith.constant 0 : index
    %1 = vector.load %arg2[%c0_1, %c0_2] : memref<128x128xf32, #tpu.memory_space<vmem>>, vector<128x128xf32>
    %cst = arith.constant dense<0.000000e+00> : vector<128x128xf32>
    %2 = tpu.matmul %0, %1, %cst {dimension_numbers = #tpu.dot_dimension_numbers<[1], [0], [0], [1], [0, 0, 1, 1], [], []>} : vector<128x128xf32>, vector<128x128xf32>, vector<128x128xf32> -> vector<128x128xf32>
    %cst_3 = arith.constant dense<0.000000e+00> : vector<128xf32>
    %3 = vector.multi_reduction <add>, %2, %cst_3 [0] : vector<128x128xf32> to vector<128xf32>
    %4 = vector.shape_cast %3 : vector<128xf32> to vector<1x128xf32>
    %c0_4 = arith.constant 0 : index
    %c0_5 = arith.constant 0 : index
    %5 = vector.load %arg3[%c0_4, %c0_5] : memref<8x128xf32, #tpu.memory_space<vmem>>, vector<1x128xf32>
    tpu.vector_store %arg3[%c0_4, %c0_5], %4 {strides = array<i32>} : memref<8x128xf32, #tpu.memory_space<vmem>>, vector<1x128xf32>,
    %6 = arith.mulf %2, %2 : vector<128x128xf32>
    %cst_6 = arith.constant dense<0.000000e+00> : vector<128xf32>
    %7 = vector.multi_reduction <add>, %6, %cst_6 [0] : vector<128x128xf32> to vector<128xf32>
    %8 = vector.shape_cast %7 : vector<128xf32> to vector<1x128xf32>
    %c1 = arith.constant 1 : index
    %c0_7 = arith.constant 0 : index
    %9 = vector.load %arg3[%c1, %c0_7] : memref<8x128xf32, #tpu.memory_space<vmem>>, vector<1x128xf32>
    tpu.vector_store %arg3[%c1, %c0_7], %8 {strides = array<i32>} : memref<8x128xf32, #tpu.memory_space<vmem>>, vector<1x128xf32>,
    return
  }
  func.func @transform_0(%arg0: i32) -> (i32, i32) {
    %c0_i32 = arith.constant 0 : i32
    %c0_i32_0 = arith.constant 0 : i32
    return %arg0, %c0_i32 : i32, i32
  }
  func.func @transform_1(%arg0: i32) -> (i32, i32) {
    %c0_i32 = arith.constant 0 : i32
    %c0_i32_0 = arith.constant 0 : i32
    %c0_i32_1 = arith.constant 0 : i32
    return %c0_i32, %c0_i32_0 : i32, i32
  }
  func.func @transform_2(%arg0: i32) -> (i32, i32) {
    %c0_i32 = arith.constant 0 : i32
    %c0_i32_0 = arith.constant 0 : i32
    return %arg0, %c0_i32 : i32, i32
  }
}

</mosaic_0001>

<llo_original>
// kernel: tpu_custom_call.1
$region0: #{tpu_custom_call.1}
  #allocation0 [shape = 'u32[]', space=smem, size = 0x4, offset = 0x4, fixed_abs, tag = 'smem constant byte address 0x4 - core index']
  #allocation1 [shape = 'u32[144,128]{1,0:T(1,128)}', space=vmem, size = 0x12000, scoped, tag = 'internal scratch']
  %s0 = inlined_call_operand.hbm [shape: f32[128,128], index: 0, kind: input, shape index: {}]
  %s1 = inlined_call_operand.hbm [shape: f32[128,128], index: 1, kind: input, shape index: {}]
  %s2 = inlined_call_operand.hbm [shape: f32[8,128], index: 2, kind: output, shape index: {}]
  %s3 = sld [smem:[#allocation0]]
  $region26: #{tpu_custom_call.1} parent=0
    _
  %s5 = ssub.s32 1, %s3
  %s6 = scalar_select 0, %s5, %s3
  $region1: #{tpu_custom_call.1} parent=0
    #allocation2 [shape = 'u8[65536]{0}', space=vmem, size = 0x10000, scoped, tag = 'input window, operand 0, single buffered']
    #allocation3 [shape = 's32[1]{0}', space=sflag, size = 0x4, scoped, tag = 'scoped memory for tpu_custom_call.1']
    #allocation4 [shape = 's32[1]{0}', space=sflag, size = 0x4, scoped, tag = 'scoped memory for tpu_custom_call.1']
    #allocation5 [shape = 'u8[65536]{0}', space=vmem, size = 0x10000, scoped, tag = 'input window, operand 1, single buffered']
    #allocation6 [shape = 's32[1]{0}', space=sflag, size = 0x4, scoped, tag = 'scoped memory for tpu_custom_call.1']
    #allocation7 [shape = 'u8[4096]{0}', space=vmem, size = 0x1000, scoped, tag = 'output window, operand 0, single buffered']
    %7 = vsyncpa [#allocation3], 0
    %8 = vsyncpa [#allocation6], 0
    %9 = vsyncpa [#allocation4], 0
    // Predicated region
    $region2: #{tpu_custom_call.1} parent=1 // pred_check
      _
    $region3: #{tpu_custom_call.1} parent=1 // pred_check_branch
      %11 = sbr.rel (0) target = $region5
    $region4: #{tpu_custom_call.1} parent=1 // pred_region
      %s13 = ssub.s32 2048, 2048
      %14 = vsyncadd [#allocation3], %s13
      %s15 = sshll.u32 [#allocation2], 4
      %s16 = int_to_ptr.vmem [resolvable:$true] %s15
      %21 = dma.hbm_to_vmem [thread:$0]  %s0, 2048, %s16, [#allocation3], 128, 128, 8
    $region5: #{tpu_custom_call.1} parent=1 // pred_fallthru
      _
    // Predicated region
    $region6: #{tpu_custom_call.1} parent=1 // pred_check
      _
    $region7: #{tpu_custom_call.1} parent=1 // pred_check_branch
      %23 = sbr.rel (0) target = $region9
    $region8: #{tpu_custom_call.1} parent=1 // pred_region
      %s25 = ssub.s32 2048, 2048
      %26 = vsyncadd [#allocation6], %s25
      %s27 = sshll.u32 [#allocation5], 4
      %s28 = int_to_ptr.vmem [resolvable:$true] %s27
      %33 = dma.hbm_to_vmem [thread:$0]  %s1, 2048, %s28, [#allocation6], 128, 128, 8
    $region9: #{tpu_custom_call.1} parent=1 // pred_fallthru
      _
    // Predicated region
    $region10: #{tpu_custom_call.1} parent=1 // pred_check
      _
    $region11: #{tpu_custom_call.1} parent=1 // pred_check_branch
      %35 = sbr.rel (0) target = $region13
    $region12: #{tpu_custom_call.1} parent=1 // pred_region
      %36 = dma.done [#allocation3], 2048
    $region13: #{tpu_custom_call.1} parent=1 // pred_fallthru
      _
    // Predicated region
    $region14: #{tpu_custom_call.1} parent=1 // pred_check
      _
    $region15: #{tpu_custom_call.1} parent=1 // pred_check_branch
      %38 = sbr.rel (0) target = $region17
    $region16: #{tpu_custom_call.1} parent=1 // pred_region
      %39 = dma.done [#allocation6], 2048
    $region17: #{tpu_custom_call.1} parent=1 // pred_fallthru
      _
    %v40 = vld [vmem:[#allocation2] sm:$0xff]
    %v41 = vld [vmem:[#allocation2 + $0x8] sm:$0xff]
    %v42 = vld [vmem:[#allocation2 + $0x10] sm:$0xff]
    %v43 = vld [vmem:[#allocation2 + $0x18] sm:$0xff]
    %v44 = vld [vmem:[#allocation2 + $0x20] sm:$0xff]
    %v45 = vld [vmem:[#allocation2 + $0x28] sm:$0xff]
    %v46 = vld [vmem:[#allocation2 + $0x30] sm:$0xff]
    %v47 = vld [vmem:[#allocation2 + $0x38] sm:$0xff]
    %v48 = vld [vmem:[#allocation2 + $0x40] sm:$0xff]
    %v49 = vld [vmem:[#allocation2 + $0x48] sm:$0xff]
    %v50 = vld [vmem:[#allocation2 + $0x50] sm:$0xff]
    %v51 = vld [vmem:[#allocation2 + $0x58] sm:$0xff]
    %v52 = vld [vmem:[#allocation2 + $0x60] sm:$0xff]
    %v53 = vld [vmem:[#allocation2 + $0x68] sm:$0xff]
    %v54 = vld [vmem:[#allocation2 + $0x70] sm:$0xff]
    %v55 = vld [vmem:[#allocation2 + $0x78] sm:$0xff]
    %v56 = vld [vmem:[#allocation5] sm:$0xff]
    %v57 = vld [vmem:[#allocation5 + $0x8] sm:$0xff]
    %v58 = vld [vmem:[#allocation5 + $0x10] sm:$0xff]
    %v59 = vld [vmem:[#allocation5 + $0x18] sm:$0xff]
    %v60 = vld [vmem:[#allocation5 + $0x20] sm:$0xff]
    %v61 = vld [vmem:[#allocation5 + $0x28] sm:$0xff]
    %v62 = vld [vmem:[#allocation5 + $0x30] sm:$0xff]
    %v63 = vld [vmem:[#allocation5 + $0x38] sm:$0xff]
    %v64 = vld [vmem:[#allocation5 + $0x40] sm:$0xff]
    %v65 = vld [vmem:[#allocation5 + $0x48] sm:$0xff]
    %v66 = vld [vmem:[#allocation5 + $0x50] sm:$0xff]
    %v67 = vld [vmem:[#allocation5 + $0x58] sm:$0xff]
    %v68 = vld [vmem:[#allocation5 + $0x60] sm:$0xff]
    %v69 = vld [vmem:[#allocation5 + $0x68] sm:$0xff]
    %v70 = vld [vmem:[#allocation5 + $0x70] sm:$0xff]
    %v71 = vld [vmem:[#allocation5 + $0x78] sm:$0xff]
    %72 = vmatprep.subr.mxu0 0.0
    %73 = vmatpush1.msra.mxu0 %v56
    %74 = vmatprep.subr.mxu0 0.0
    %75 = vmatpush1.msra.mxu0 %v57
    %76 = vmatprep.subr.mxu0 0.0
    %77 = vmatpush1.msra.mxu0 %v58
    %78 = vmatprep.subr.mxu0 0.0
    %79 = vmatpush1.msra.mxu0 %v59
    %80 = vmatprep.subr.mxu0 0.0
    %81 = vmatpush1.msra.mxu0 %v60
    %82 = vmatprep.subr.mxu0 0.0
    %83 = vmatpush1.msra.mxu0 %v61
    %84 = vmatprep.subr.mxu0 0.0
    %85 = vmatpush1.msra.mxu0 %v62
    %86 = vmatprep.subr.mxu0 0.0
    %87 = vmatpush1.msra.mxu0 %v63
    %88 = vmatprep.subr.mxu0 0.0
    %89 = vmatpush1.msra.mxu0 %v64
    %90 = vmatprep.subr.mxu0 0.0
    %91 = vmatpush1.msra.mxu0 %v65
    %92 = vmatprep.subr.mxu0 0.0
    %93 = vmatpush1.msra.mxu0 %v66
    %94 = vmatprep.subr.mxu0 0.0
    %95 = vmatpush1.msra.mxu0 %v67
    %96 = vmatprep.subr.mxu0 0.0
    %97 = vmatpush1.msra.mxu0 %v68
    %98 = vmatprep.subr.mxu0 0.0
    %99 = vmatpush1.msra.mxu0 %v69
    %100 = vmatprep.subr.mxu0 0.0
    %101 = vmatpush1.msra.mxu0 %v70
    %102 = vmatprep.subr.mxu0 0.0
    %103 = vmatpush1.msra.mxu0 %v71
    %104 = vmatprep.subr.mxu0 0.0
    %105 = vmatpush1.msra.mxu0 0.0
    %106 = vmatprep.subr.mxu0 0.0
    %107 = vmatpush1.msra.mxu0 0.0
    %108 = vmatprep.subr.mxu0 0.0
    %109 = vmatpush1.msra.mxu0 0.0
    %110 = vmatprep.subr.mxu0 0.0
    %111 = vmatpush1.msra.mxu0 0.0
    %112 = vmatprep.subr.mxu0 0.0
    %113 = vmatpush1.msra.mxu0 0.0
    %114 = vmatprep.subr.mxu0 0.0
    %115 = vmatpush1.msra.mxu0 0.0
    %116 = vmatprep.subr.mxu0 0.0
    %117 = vmatpush1.msra.mxu0 0.0
    %118 = vmatprep.subr.mxu0 0.0
    %119 = vmatpush1.msra.mxu0 0.0
    %120 = vmatprep.subr.mxu0 0.0
    %121 = vmatpush1.msra.mxu0 0.0
    %122 = vmatprep.subr.mxu0 0.0
    %123 = vmatpush1.msra.mxu0 0.0
    %124 = vmatprep.subr.mxu0 0.0
    %125 = vmatpush1.msra.mxu0 0.0
    %126 = vmatprep.subr.mxu0 0.0
    %127 = vmatpush1.msra.mxu0 0.0
    %128 = vmatprep.subr.mxu0 0.0
    %129 = vmatpush1.msra.mxu0 0.0
    %130 = vmatprep.subr.mxu0 0.0
    %131 = vmatpush1.msra.mxu0 0.0
    %132 = vmatprep.subr.mxu0 0.0
    %133 = vmatpush1.msra.mxu0 0.0
    %134 = vmatprep.subr.mxu0 0.0
    %135 = vmatpush1.msra.mxu0 0.0
    %136 = vmatprep.mubr.f32.mxu0 0.0
    %137 = vmatmul.mubr.f32.gmra.mrb[0].mxu0 %v40
    %v138 = vpop.f32.mrb[0].mxu0
    %v139 = vadd.f32 0.0, %v138
    %v140 = vpop.f32.mrb[0].mxu0
    %141 = vmatprep.mubr.f32.mxu0 0.0
    %142 = vmatmul.mubr.f32.gmra.mrb[0].mxu0 %v41
    %v143 = vpop.f32.mrb[0].mxu0
    %v144 = vadd.f32 0.0, %v143
    %v145 = vpop.f32.mrb[0].mxu0
    %146 = vmatprep.mubr.f32.mxu0 0.0
    %147 = vmatmul.mubr.f32.gmra.mrb[0].mxu0 %v42
    %v148 = vpop.f32.mrb[0].mxu0
    %v149 = vadd.f32 0.0, %v148
    %v150 = vpop.f32.mrb[0].mxu0
    %151 = vmatprep.mubr.f32.mxu0 0.0
    %152 = vmatmul.mubr.f32.gmra.mrb[0].mxu0 %v43
    %v153 = vpop.f32.mrb[0].mxu0
    %v154 = vadd.f32 0.0, %v153
    %v155 = vpop.f32.mrb[0].mxu0
    %156 = vmatprep.mubr.f32.mxu0 0.0
    %157 = vmatmul.mubr.f32.gmra.mrb[0].mxu0 %v44
    %v158 = vpop.f32.mrb[0].mxu0
    %v159 = vadd.f32 0.0, %v158
    %v160 = vpop.f32.mrb[0].mxu0
    %161 = vmatprep.mubr.f32.mxu0 0.0
    %162 = vmatmul.mubr.f32.gmra.mrb[0].mxu0 %v45
    %v163 = vpop.f32.mrb[0].mxu0
    %v164 = vadd.f32 0.0, %v163
    %v165 = vpop.f32.mrb[0].mxu0
    %166 = vmatprep.mubr.f32.mxu0 0.0
    %167 = vmatmul.mubr.f32.gmra.mrb[0].mxu0 %v46
    %v168 = vpop.f32.mrb[0].mxu0
    %v169 = vadd.f32 0.0, %v168
    %v170 = vpop.f32.mrb[0].mxu0
    %171 = vmatprep.mubr.f32.mxu0 0.0
    %172 = vmatmul.mubr.f32.gmra.mrb[0].mxu0 %v47
    %v173 = vpop.f32.mrb[0].mxu0
    %v174 = vadd.f32 0.0, %v173
    %v175 = vpop.f32.mrb[0].mxu0
    %176 = vmatprep.mubr.f32.mxu0 0.0
    %177 = vmatmul.mubr.f32.gmra.mrb[0].mxu0 %v48
    %v178 = vpop.f32.mrb[0].mxu0
    %v179 = vadd.f32 0.0, %v178
    %v180 = vpop.f32.mrb[0].mxu0
    %181 = vmatprep.mubr.f32.mxu0 0.0
    %182 = vmatmul.mubr.f32.gmra.mrb[0].mxu0 %v49
    %v183 = vpop.f32.mrb[0].mxu0
    %v184 = vadd.f32 0.0, %v183
    %v185 = vpop.f32.mrb[0].mxu0
    %186 = vmatprep.mubr.f32.mxu0 0.0
    %187 = vmatmul.mubr.f32.gmra.mrb[0].mxu0 %v50
    %v188 = vpop.f32.mrb[0].mxu0
    %v189 = vadd.f32 0.0, %v188
    %v190 = vpop.f32.mrb[0].mxu0
    %191 = vmatprep.mubr.f32.mxu0 0.0
    %192 = vmatmul.mubr.f32.gmra.mrb[0].mxu0 %v51
    %v193 = vpop.f32.mrb[0].mxu0
    %v194 = vadd.f32 0.0, %v193
    %v195 = vpop.f32.mrb[0].mxu0
    %196 = vmatprep.mubr.f32.mxu0 0.0
    %197 = vmatmul.mubr.f32.gmra.mrb[0].mxu0 %v52
    %v198 = vpop.f32.mrb[0].mxu0
    %v199 = vadd.f32 0.0, %v198
    %v200 = vpop.f32.mrb[0].mxu0
    %201 = vmatprep.mubr.f32.mxu0 0.0
    %202 = vmatmul.mubr.f32.gmra.mrb[0].mxu0 %v53
    %v203 = vpop.f32.mrb[0].mxu0
    %v204 = vadd.f32 0.0, %v203
    %v205 = vpop.f32.mrb[0].mxu0
    %206 = vmatprep.mubr.f32.mxu0 0.0
    %207 = vmatmul.mubr.f32.gmra.mrb[0].mxu0 %v54
    %v208 = vpop.f32.mrb[0].mxu0
    %v209 = vadd.f32 0.0, %v208
    %v210 = vpop.f32.mrb[0].mxu0
    %211 = vmatprep.mubr.f32.mxu0 0.0
    %212 = vmatmul.mubr.f32.gmra.mrb[0].mxu0 %v55
    %v213 = vpop.f32.mrb[0].mxu0
    %v214 = vadd.f32 0.0, %v213
    %v215 = vpop.f32.mrb[0].mxu0
    %216 = vdwg.mxu0
    %v217 = vadd.f32 %v139, %v144
    %v218 = vadd.f32 %v217, %v149
    %v219 = vadd.f32 %v218, %v154
    %v220 = vadd.f32 %v219, %v159
    %v221 = vadd.f32 %v220, %v164
    %v222 = vadd.f32 %v221, %v169
    %v223 = vadd.f32 %v222, %v174
    %v224 = vadd.f32 %v223, %v179
    %v225 = vadd.f32 %v224, %v184
    %v226 = vadd.f32 %v225, %v189
    %v227 = vadd.f32 %v226, %v194
    %v228 = vadd.f32 %v227, %v199
    %v229 = vadd.f32 %v228, %v204
    %v230 = vadd.f32 %v229, %v209
    %v231 = vadd.f32 %v230, %v214
    %v232 = vrot.slane %v231, 4
    %v233 = vadd.f32 %v231, %v232
    %v234 = vrot.slane %v233, 2
    %v235 = vadd.f32 %v233, %v234
    %v236 = vrot.slane %v235, 1
    %v237 = vadd.f32 %v235, %v236
    %238 = vst [vmem:[#allocation7] sm:$0x1] %v237
    %v239 = vmul.f32 %v139, %v139
    %v240 = vmul.f32 %v144, %v144
    %v241 = vmul.f32 %v149, %v149
    %v242 = vmul.f32 %v154, %v154
    %v243 = vmul.f32 %v159, %v159
    %v244 = vmul.f32 %v164, %v164
    %v245 = vmul.f32 %v169, %v169
    %v246 = vmul.f32 %v174, %v174
    %v247 = vmul.f32 %v179, %v179
    %v248 = vmul.f32 %v184, %v184
    %v249 = vmul.f32 %v189, %v189
    %v250 = vmul.f32 %v194, %v194
    %v251 = vmul.f32 %v199, %v199
    %v252 = vmul.f32 %v204, %v204
    %v253 = vmul.f32 %v209, %v209
    %v254 = vmul.f32 %v214, %v214
    %v255 = vadd.f32 %v239, %v240
    %v256 = vadd.f32 %v255, %v241
    %v257 = vadd.f32 %v256, %v242
    %v258 = vadd.f32 %v257, %v243
    %v259 = vadd.f32 %v258, %v244
    %v260 = vadd.f32 %v259, %v245
    %v261 = vadd.f32 %v260, %v246
    %v262 = vadd.f32 %v261, %v247
    %v263 = vadd.f32 %v262, %v248
    %v264 = vadd.f32 %v263, %v249
    %v265 = vadd.f32 %v264, %v250
    %v266 = vadd.f32 %v265, %v251
    %v267 = vadd.f32 %v266, %v252
    %v268 = vadd.f32 %v267, %v253
    %v269 = vadd.f32 %v268, %v254
    %v270 = vrot.slane %v269, 4
    %v271 = vadd.f32 %v269, %v270
    %v272 = vrot.slane %v271, 2
    %v273 = vadd.f32 %v271, %v272
    %v274 = vrot.slane %v273, 1
    %v275 = vadd.f32 %v273, %v274
    %276 = vst [vmem:[#allocation7 + $0x1] sm:$0x1] %v275
    // Predicated region
    $region18: #{tpu_custom_call.1} parent=1 // pred_check
      _
    $region19: #{tpu_custom_call.1} parent=1 // pred_check_branch
      %278 = sbr.rel (0) target = $region21
    $region20: #{tpu_custom_call.1} parent=1 // pred_region
      %s280 = ssub.s32 128, 128
      %281 = vsyncadd [#allocation4], %s280
      %s283 = sshll.u32 [#allocation7], 4
      %s284 = int_to_ptr.vmem [resolvable:$true] %s283
      %286 = dma.vmem_to_hbm [thread:$0]  %s284, 128, %s2, [#allocation4]
    $region21: #{tpu_custom_call.1} parent=1 // pred_fallthru
      _
    // Predicated region
    $region22: #{tpu_custom_call.1} parent=1 // pred_check
      _
    $region23: #{tpu_custom_call.1} parent=1 // pred_check_branch
      %288 = sbr.rel (0) target = $region25
    $region24: #{tpu_custom_call.1} parent=1 // pred_region
      %289 = dma.done [#allocation4], 128
    $region25: #{tpu_custom_call.1} parent=1 // pred_fallthru
      _
    %290 = vsyncpa [#allocation3], 1
    %291 = vsyncpa [#allocation6], 1
    %292 = vsyncpa [#allocation4], 1

</llo_original>
